<compile_context>
chip_gen: v5e
topology: v5e:2x2
jax: 0.10.0
libtpu: 0.0.40
codegen_flags: <defaults>
</compile_context>

<pallas_src>
import functools

import jax
import jax.numpy as jnp
from jax.experimental import pallas as pl
from jax.experimental.pallas import tpu as pltpu


def _round_up(n, m):
    return ((n + m - 1) // m) * m


# ----------------------------------------------------------------------------
# hidden-dim selection: faithful port of the 'auto' branch of __init__
# ----------------------------------------------------------------------------
def auto_hidden_dim(input_shape, layer_list=(20, 40, 80, 256, 1024)):
    layer_list = list(layer_list)
    if input_shape <= 20:
        hidden_dim = [10, input_shape]
    else:
        hidden_dim = []
        for idx in range(len(layer_list)):
            if layer_list[idx] <= input_shape:
                hidden_dim.append(layer_list[idx])
            elif input_shape - layer_list[idx - 1] < layer_list[idx - 1] * 0.1:
                hidden_dim[-1] = input_shape
            else:
                hidden_dim.append(input_shape)
        if input_shape > layer_list[-1] * 1.5:
            hidden_dim.append(input_shape)
        else:
            hidden_dim[-1] = input_shape
        if len(hidden_dim) < 2:
            hidden_dim = [10, input_shape]
    hidden_dim.reverse()
    return hidden_dim


# ----------------------------------------------------------------------------
# Pallas kernel: whole forward pass for one batch tile
# ----------------------------------------------------------------------------
def _fwd_kernel(x_ref,
                ew1, eb1, ew2, eb2,     # encoder
                w1f, b1f, w2f, b2f,     # fused decoder/scores heads
                out_ref):
    """Fused layers (built once, wrapper-side):
         w1f = [dw1 | sw1]               (H2, H1+S1)   decoder-l1 & scores-l1
         w2f = blockdiag(sw2, dw2)       (H1+S1, 1+D)  scores-l2 in col 0,
                                                        decoder-l2 in cols 1..D
       Output: one lane-dense (tile_b, PACK) slab
         lane 0              : scores
         lanes 1 .. D        : dec
         lanes 1+D .. D+H2   : enc
         remaining lanes     : zero pad (PACK is a multiple of 128)
    """
    x = x_ref[...]

    # encoder (ReLU after both layers, matching the PyTorch module)
    h1 = jnp.maximum(
        jnp.dot(x, ew1[...], preferred_element_type=jnp.float32) + eb1[...], 0.0)
    enc = jnp.maximum(
        jnp.dot(h1.astype(ew2.dtype), ew2[...],
                preferred_element_type=jnp.float32) + eb2[...], 0.0)

    # fused decoder-l1 / scores-l1 (both followed by ReLU in the module)
    ds = jnp.maximum(
        jnp.dot(enc.astype(w1f.dtype), w1f[...],
                preferred_element_type=jnp.float32) + b1f[...], 0.0)

    # fused decoder-l2 / scores-l2 (no ReLU, matching the PyTorch module)
    sd = jnp.dot(ds.astype(w2f.dtype), w2f[...],
                 preferred_element_type=jnp.float32) + b2f[...]   # [scores | dec]

    pieces = [sd, enc]
    pad_w = out_ref.shape[1] - sd.shape[1] - enc.shape[1]
    if pad_w > 0:
        pieces.append(jnp.zeros((sd.shape[0], pad_w), jnp.float32))
    out_ref[...] = jnp.concatenate(pieces, axis=-1).astype(out_ref.dtype)


# ----------------------------------------------------------------------------
# Wrapper: param fusion, tiling, pallas_call, output unpacking
# ----------------------------------------------------------------------------
def pack_params(params, *, use_bf16=False):
    (ew1, eb1, ew2, eb2, dw1, db1, dw2, db2, sw1, sb1, sw2, sb2) = params
    H1 = dw1.shape[1]          # 40
    D_in = dw2.shape[1]        # 64
    w1f = jnp.concatenate([dw1, sw1], axis=1)          # (H2, H1+S1)
    b1f = jnp.concatenate([db1, sb1], axis=1)          # (1, H1+S1)
    w2f = jnp.zeros((w1f.shape[1], 1 + D_in), jnp.float32)
    w2f = w2f.at[H1:, 0:1].set(sw2)                    # scores branch -> col 0
    w2f = w2f.at[:H1, 1:].set(dw2)                     # decoder branch -> cols 1..D
    b2f = jnp.concatenate([sb2, db2], axis=1)          # (1, 1+D_in)
    packed = (ew1, eb1, ew2, eb2, w1f, b1f, w2f, b2f)
    if use_bf16:
        # weights (fan_in > 1) in bf16 for MXU/HBM; biases stay f32 (added to
        # the f32 accumulator), accumulation stays f32.
        packed = tuple(p.astype(jnp.bfloat16) if p.shape[0] > 1 else p
                       for p in packed)
    return packed


def score_guided_autoencoder_forward(x, params, *, tile_b=512, use_bf16=False):
    """Pallas forward pass. x: (B, D_in). Returns (scores, dec, enc) in f32."""
    B, D_in = x.shape
    packed_params = pack_params(params, use_bf16=use_bf16)
    H2 = packed_params[2].shape[1]            # bottleneck width (enc dim)
    PACK = _round_up(1 + D_in + H2, 128)      # lane-dense packed output width

    # ---- batch tile selection (multiple of 8 f32 sublanes) ----------------
    Bp8 = _round_up(B, 8)
    tb = max(8, min(_round_up(tile_b, 8), Bp8))
    # keep >= 2 grid steps when the batch allows so dimension_semantics
    # ("parallel",) can shard grid steps across the two v7x TensorCores
    if Bp8 >= 16 and Bp8 // tb < 2:
        tb = _round_up(pl.cdiv(Bp8, 2), 8)
    B_pad = _round_up(B, tb)

    xin = x.astype(jnp.bfloat16) if use_bf16 else x
    if B_pad != B:
        xin = jnp.pad(xin, ((0, B_pad - B), (0, 0)))

    # ---- scheduler cost hint ----------------------------------------------
    mm_flops = sum(2 * w.shape[0] * w.shape[1]
                   for w in (packed_params[0], packed_params[2],
                             packed_params[4], packed_params[6]))
    bytes_accessed = (B_pad * D_in * xin.dtype.itemsize
                      + B_pad * PACK * 4
                      + sum(int(p.size) * p.dtype.itemsize for p in packed_params))
    cost = pl.CostEstimate(flops=int(B_pad * mm_flops), transcendentals=0,
                           bytes_accessed=int(bytes_accessed))

    grid = (B_pad // tb,)
    in_specs = [pl.BlockSpec((tb, D_in), lambda i: (i, 0))]
    # weights/biases: one full-array block, same block index for every grid
    # step -> stays resident in VMEM, no per-step re-DMA
    in_specs += [pl.BlockSpec(p.shape, lambda i: (0, 0)) for p in packed_params]

    packed_out = pl.pallas_call(
        _fwd_kernel,
        out_shape=jax.ShapeDtypeStruct((B_pad, PACK), jnp.float32),
        grid_spec=pltpu.PrefetchScalarGridSpec(
            num_scalar_prefetch=0,
            grid=grid,
            in_specs=in_specs,
            out_specs=pl.BlockSpec((tb, PACK), lambda i: (i, 0)),
        ),
        compiler_params=pltpu.CompilerParams(
            dimension_semantics=("parallel",)),
        cost_estimate=cost,
    )(xin, *packed_params)

    scores = packed_out[:B, 0:1]
    dec = packed_out[:B, 1:1 + D_in]
    enc = packed_out[:B, 1 + D_in:1 + D_in + H2]
    return scores, dec, enc


# jit-compiled entry point: folds param fusion into the compiled graph and
# avoids host-side dispatch of pack/pad/slice ops per call.
score_guided_autoencoder_forward_jit = jax.jit(
    score_guided_autoencoder_forward, static_argnames=("tile_b", "use_bf16"))


# ----------------------------------------------------------------------------
# Deterministic parameter init (PyTorch-style U(-1/sqrt(fan_in), 1/sqrt(fan_in)))
# ----------------------------------------------------------------------------
def init_linear(key, fan_in, fan_out):
    kw, kb = jax.random.split(key)
    bound = 1.0 / jnp.sqrt(float(fan_in))
    w = jax.random.uniform(kw, (fan_in, fan_out), jnp.float32, -bound, bound)
    b = jax.random.uniform(kb, (1, fan_out), jnp.float32, -bound, bound)
    return w, b


def make_params(key, hidden_dim):
    # hidden_dim e.g. [64, 40, 20]
    keys = jax.random.split(key, 6)
    ew1, eb1 = init_linear(keys[0], hidden_dim[0], hidden_dim[1])   # 64 -> 40
    ew2, eb2 = init_linear(keys[1], hidden_dim[1], hidden_dim[2])   # 40 -> 20
    dw1, db1 = init_linear(keys[2], hidden_dim[2], hidden_dim[1])   # 20 -> 40
    dw2, db2 = init_linear(keys[3], hidden_dim[1], hidden_dim[0])   # 40 -> 64
    sw1, sb1 = init_linear(keys[4], hidden_dim[-1], 10)             # 20 -> 10
    sw2, sb2 = init_linear(keys[5], 10, 1)                          # 10 -> 1
    return (ew1, eb1, ew2, eb2, dw1, db1, dw2, db2, sw1, sb1, sw2, sb2)


def reference_forward(x, params):
    (ew1, eb1, ew2, eb2, dw1, db1, dw2, db2, sw1, sb1, sw2, sb2) = params
    h1 = jnp.maximum(x @ ew1 + eb1, 0.0)
    enc = jnp.maximum(h1 @ ew2 + eb2, 0.0)
    d1 = jnp.maximum(enc @ dw1 + db1, 0.0)
    dec = d1 @ dw2 + db2
    s1 = jnp.maximum(enc @ sw1 + sb1, 0.0)
    scores = s1 @ sw2 + sb2
    return scores, dec, enc


if __name__ == "__main__":
    input_shape = 64
    batch = 256                                   # -> tile 128, 2 parallel grid steps
    hidden_dim = auto_hidden_dim(input_shape)     # -> [64, 40, 20]
    assert hidden_dim == [64, 40, 20]

    key = jax.random.PRNGKey(0)
    kx, kp = jax.random.split(key)
    x = jax.random.normal(kx, (batch, input_shape), jnp.float32)
    params = make_params(kp, hidden_dim)

    # default f32 path
    scores, dec, enc = score_guided_autoencoder_forward_jit(x, params, tile_b=512)
    jax.block_until_ready((scores, dec, enc))

    r_scores, r_dec, r_enc = reference_forward(x, params)
    assert scores.shape == (batch, 1)
    assert dec.shape == (batch, input_shape)
    assert enc.shape == (batch, hidden_dim[-1])
    assert jnp.allclose(scores, r_scores, atol=1e-5)
    assert jnp.allclose(dec, r_dec, atol=1e-5)
    assert jnp.allclose(enc, r_enc, atol=1e-5)

    # optional bf16-operand path (v6e/v7x bandwidth & MXU win), f32 accumulation
    s_bf, d_bf, e_bf = score_guided_autoencoder_forward_jit(
        x, params, tile_b=512, use_bf16=True)
    jax.block_until_ready((s_bf, d_bf, e_bf))
    assert jnp.allclose(s_bf, r_scores, atol=0.25)
    assert jnp.allclose(d_bf, r_dec, atol=0.25)
    assert jnp.allclose(e_bf, r_enc, atol=0.25)

    # non-multiple batch path (padding + slice-off) sanity check
    xr = x[:100]
    s_r, d_r, e_r = score_guided_autoencoder_forward_jit(xr, params, tile_b=512)
    jax.block_until_ready((s_r, d_r, e_r))
    assert jnp.allclose(s_r, r_scores[:100], atol=1e-5)
    assert jnp.allclose(d_r, r_dec[:100], atol=1e-5)
    assert jnp.allclose(e_r, r_enc[:100], atol=1e-5)

    print("KERNEL_OK")
</pallas_src>

<mosaic_0001>
module attributes {stable_mosaic.version = 11 : i64} {
  func.func @_fwd_kernel(%arg0: i32, %arg1: memref<128x64xf32, #tpu.memory_space<vmem>>, %arg2: memref<64x40xf32, #tpu.memory_space<vmem>>, %arg3: memref<1x40xf32, #tpu.memory_space<vmem>>, %arg4: memref<40x20xf32, #tpu.memory_space<vmem>>, %arg5: memref<1x20xf32, #tpu.memory_space<vmem>>, %arg6: memref<20x50xf32, #tpu.memory_space<vmem>>, %arg7: memref<1x50xf32, #tpu.memory_space<vmem>>, %arg8: memref<50x65xf32, #tpu.memory_space<vmem>>, %arg9: memref<1x65xf32, #tpu.memory_space<vmem>>, %arg10: memref<128x128xf32, #tpu.memory_space<vmem>>) attributes {dimension_semantics = [#tpu.dimension_semantics<parallel>], iteration_bounds = array<i64: 2>, scalar_prefetch = 0 : i64, scratch_operands = 0 : i64, tpu.core_type = #tpu.core_type<tc>, window_params = [{transform_indices = @transform_0, window_bounds = array<i64: 128, 64>}, {pipeline_mode = #tpu.pipeline_mode<synchronous>, transform_indices = @transform_1, window_bounds = array<i64: 64, 40>}, {pipeline_mode = #tpu.pipeline_mode<synchronous>, transform_indices = @transform_2, window_bounds = array<i64: 1, 40>}, {pipeline_mode = #tpu.pipeline_mode<synchronous>, transform_indices = @transform_3, window_bounds = array<i64: 40, 20>}, {pipeline_mode = #tpu.pipeline_mode<synchronous>, transform_indices = @transform_4, window_bounds = array<i64: 1, 20>}, {pipeline_mode = #tpu.pipeline_mode<synchronous>, transform_indices = @transform_5, window_bounds = array<i64: 20, 50>}, {pipeline_mode = #tpu.pipeline_mode<synchronous>, transform_indices = @transform_6, window_bounds = array<i64: 1, 50>}, {pipeline_mode = #tpu.pipeline_mode<synchronous>, transform_indices = @transform_7, window_bounds = array<i64: 50, 65>}, {pipeline_mode = #tpu.pipeline_mode<synchronous>, transform_indices = @transform_8, window_bounds = array<i64: 1, 65>}, {transform_indices = @transform_9, window_bounds = array<i64: 128, 128>}]} {
    %c0 = arith.constant 0 : index
    %c0_0 = arith.constant 0 : index
    %0 = vector.load %arg1[%c0, %c0_0] : memref<128x64xf32, #tpu.memory_space<vmem>>, vector<128x64xf32>
    %c0_1 = arith.constant 0 : index
    %c0_2 = arith.constant 0 : index
    %1 = vector.load %arg2[%c0_1, %c0_2] : memref<64x40xf32, #tpu.memory_space<vmem>>, vector<64x40xf32>
    %cst = arith.constant dense<0.000000e+00> : vector<128x40xf32>
    %2 = tpu.matmul %0, %1, %cst {dimension_numbers = #tpu.dot_dimension_numbers<[1], [0], [0], [1], [0, 0, 1, 1], [], []>} : vector<128x64xf32>, vector<64x40xf32>, vector<128x40xf32> -> vector<128x40xf32>
    %c0_3 = arith.constant 0 : index
    %c0_4 = arith.constant 0 : index
    %3 = vector.load %arg3[%c0_3, %c0_4] : memref<1x40xf32, #tpu.memory_space<vmem>>, vector<1x40xf32>
    %4 = vector.broadcast %3 : vector<1x40xf32> to vector<128x40xf32>
    %5 = arith.addf %2, %4 : vector<128x40xf32>
    %cst_5 = arith.constant 0.000000e+00 : f32
    %6 = vector.broadcast %cst_5 : f32 to vector<128x40xf32>
    %7 = arith.maximumf %5, %6 : vector<128x40xf32>
    %c0_6 = arith.constant 0 : index
    %c0_7 = arith.constant 0 : index
    %8 = vector.load %arg4[%c0_6, %c0_7] : memref<40x20xf32, #tpu.memory_space<vmem>>, vector<40x20xf32>
    %cst_8 = arith.constant dense<0.000000e+00> : vector<128x20xf32>
    %9 = tpu.matmul %7, %8, %cst_8 {dimension_numbers = #tpu.dot_dimension_numbers<[1], [0], [0], [1], [0, 0, 1, 1], [], []>} : vector<128x40xf32>, vector<40x20xf32>, vector<128x20xf32> -> vector<128x20xf32>
    %c0_9 = arith.constant 0 : index
    %c0_10 = arith.constant 0 : index
    %10 = vector.load %arg5[%c0_9, %c0_10] : memref<1x20xf32, #tpu.memory_space<vmem>>, vector<1x20xf32>
    %11 = vector.broadcast %10 : vector<1x20xf32> to vector<128x20xf32>
    %12 = arith.addf %9, %11 : vector<128x20xf32>
    %cst_11 = arith.constant 0.000000e+00 : f32
    %13 = vector.broadcast %cst_11 : f32 to vector<128x20xf32>
    %14 = arith.maximumf %12, %13 : vector<128x20xf32>
    %c0_12 = arith.constant 0 : index
    %c0_13 = arith.constant 0 : index
    %15 = vector.load %arg6[%c0_12, %c0_13] : memref<20x50xf32, #tpu.memory_space<vmem>>, vector<20x50xf32>
    %cst_14 = arith.constant dense<0.000000e+00> : vector<128x50xf32>
    %16 = tpu.matmul %14, %15, %cst_14 {dimension_numbers = #tpu.dot_dimension_numbers<[1], [0], [0], [1], [0, 0, 1, 1], [], []>} : vector<128x20xf32>, vector<20x50xf32>, vector<128x50xf32> -> vector<128x50xf32>
    %c0_15 = arith.constant 0 : index
    %c0_16 = arith.constant 0 : index
    %17 = vector.load %arg7[%c0_15, %c0_16] : memref<1x50xf32, #tpu.memory_space<vmem>>, vector<1x50xf32>
    %18 = vector.broadcast %17 : vector<1x50xf32> to vector<128x50xf32>
    %19 = arith.addf %16, %18 : vector<128x50xf32>
    %cst_17 = arith.constant 0.000000e+00 : f32
    %20 = vector.broadcast %cst_17 : f32 to vector<128x50xf32>
    %21 = arith.maximumf %19, %20 : vector<128x50xf32>
    %c0_18 = arith.constant 0 : index
    %c0_19 = arith.constant 0 : index
    %22 = vector.load %arg8[%c0_18, %c0_19] : memref<50x65xf32, #tpu.memory_space<vmem>>, vector<50x65xf32>
    %cst_20 = arith.constant dense<0.000000e+00> : vector<128x65xf32>
    %23 = tpu.matmul %21, %22, %cst_20 {dimension_numbers = #tpu.dot_dimension_numbers<[1], [0], [0], [1], [0, 0, 1, 1], [], []>} : vector<128x50xf32>, vector<50x65xf32>, vector<128x65xf32> -> vector<128x65xf32>
    %c0_21 = arith.constant 0 : index
    %c0_22 = arith.constant 0 : index
    %24 = vector.load %arg9[%c0_21, %c0_22] : memref<1x65xf32, #tpu.memory_space<vmem>>, vector<1x65xf32>
    %25 = vector.broadcast %24 : vector<1x65xf32> to vector<128x65xf32>
    %26 = arith.addf %23, %25 : vector<128x65xf32>
    %cst_23 = arith.constant 0.000000e+00 : f32
    %27 = vector.broadcast %cst_23 : f32 to vector<128x43xf32>
    %28 = tpu.concatenate %26, %14, %27 in 1 : vector<128x65xf32>, vector<128x20xf32>, vector<128x43xf32> -> vector<128x128xf32>
    %c0_24 = arith.constant 0 : index
    %c0_25 = arith.constant 0 : index
    %29 = vector.load %arg10[%c0_24, %c0_25] : memref<128x128xf32, #tpu.memory_space<vmem>>, vector<128x128xf32>
    tpu.vector_store %arg10[%c0_24, %c0_25], %28 {strides = array<i32>} : memref<128x128xf32, #tpu.memory_space<vmem>>, vector<128x128xf32>,
    return
  }
  func.func @transform_0(%arg0: i32) -> (i32, i32) {
    %c0_i32 = arith.constant 0 : i32
    %c0_i32_0 = arith.constant 0 : i32
    return %arg0, %c0_i32 : i32, i32
  }
  func.func @transform_1(%arg0: i32) -> (i32, i32) {
    %c0_i32 = arith.constant 0 : i32
    %c0_i32_0 = arith.constant 0 : i32
    %c0_i32_1 = arith.constant 0 : i32
    return %c0_i32, %c0_i32_0 : i32, i32
  }
  func.func @transform_2(%arg0: i32) -> (i32, i32) {
    %c0_i32 = arith.constant 0 : i32
    %c0_i32_0 = arith.constant 0 : i32
    %c0_i32_1 = arith.constant 0 : i32
    return %c0_i32, %c0_i32_0 : i32, i32
  }
  func.func @transform_3(%arg0: i32) -> (i32, i32) {
    %c0_i32 = arith.constant 0 : i32
    %c0_i32_0 = arith.constant 0 : i32
    %c0_i32_1 = arith.constant 0 : i32
    return %c0_i32, %c0_i32_0 : i32, i32
  }
  func.func @transform_4(%arg0: i32) -> (i32, i32) {
    %c0_i32 = arith.constant 0 : i32
    %c0_i32_0 = arith.constant 0 : i32
    %c0_i32_1 = arith.constant 0 : i32
    return %c0_i32, %c0_i32_0 : i32, i32
  }
  func.func @transform_5(%arg0: i32) -> (i32, i32) {
    %c0_i32 = arith.constant 0 : i32
    %c0_i32_0 = arith.constant 0 : i32
    %c0_i32_1 = arith.constant 0 : i32
    return %c0_i32, %c0_i32_0 : i32, i32
  }
  func.func @transform_6(%arg0: i32) -> (i32, i32) {
    %c0_i32 = arith.constant 0 : i32
    %c0_i32_0 = arith.constant 0 : i32
    %c0_i32_1 = arith.constant 0 : i32
    return %c0_i32, %c0_i32_0 : i32, i32
  }
  func.func @transform_7(%arg0: i32) -> (i32, i32) {
    %c0_i32 = arith.constant 0 : i32
    %c0_i32_0 = arith.constant 0 : i32
    %c0_i32_1 = arith.constant 0 : i32
    return %c0_i32, %c0_i32_0 : i32, i32
  }
  func.func @transform_8(%arg0: i32) -> (i32, i32) {
    %c0_i32 = arith.constant 0 : i32
    %c0_i32_0 = arith.constant 0 : i32
    %c0_i32_1 = arith.constant 0 : i32
    return %c0_i32, %c0_i32_0 : i32, i32
  }
  func.func @transform_9(%arg0: i32) -> (i32, i32) {
    %c0_i32 = arith.constant 0 : i32
    %c0_i32_0 = arith.constant 0 : i32
    return %arg0, %c0_i32 : i32, i32
  }
}

</mosaic_0001>

<llo_original>
// kernel: score_guided_autoencoder_forward.1
$region0: #{score_guided_autoencoder_forward.1}
  #allocation0 [shape = 'u32[]', space=smem, size = 0x4, offset = 0x4, fixed_abs, tag = 'smem constant byte address 0x4 - core index']
  #allocation1 [shape = 'u32[72,128]{1,0:T(1,128)}', space=vmem, size = 0x9000, scoped, tag = 'internal scratch']
  %s0 = inlined_call_operand.vmem [shape: f32[256,64], index: 0, kind: input, shape index: {}]
  %s1 = inlined_call_operand.vmem [shape: f32[64,40], index: 1, kind: input, shape index: {}]
  %s2 = inlined_call_operand.vmem [shape: f32[1,40], index: 2, kind: input, shape index: {}]
  %s3 = inlined_call_operand.vmem [shape: f32[40,20], index: 3, kind: input, shape index: {}]
  %s4 = inlined_call_operand.vmem [shape: f32[1,20], index: 4, kind: input, shape index: {}]
  %s5 = inlined_call_operand.vmem [shape: f32[20,50], index: 5, kind: input, shape index: {}]
  %s6 = inlined_call_operand.vmem [shape: f32[1,50], index: 6, kind: input, shape index: {}]
  %s7 = inlined_call_operand.vmem [shape: f32[50,65], index: 7, kind: input, shape index: {}]
  %s8 = inlined_call_operand.vmem [shape: f32[1,65], index: 8, kind: input, shape index: {}]
  %s9 = inlined_call_operand.vmem [shape: f32[256,128], index: 9, kind: output, shape index: {}]
  %s10 = sld [smem:[#allocation0]]
  $region69: #{score_guided_autoencoder_forward.1} parent=0
    _
  %s12 = ssub.s32 1, %s10
  %s13 = scalar_select 0, %s12, %s10
  loop: start=0, step=1, limit=4
  $region2: #{score_guided_autoencoder_forward.1} parent=0 // loop_pre_header
    _
  $region3: #{score_guided_autoencoder_forward.1} parent=0 // loop_header
    %s15 = sphi 0, %s19
    %p16 = scmp.ge.s32.totalorder %s15, 4
    %s25 = sphi 0, %s27
    %s28 = sphi 0, %s25
    %s29 = sphi 0, %s28
    %s45 = sphi 0, %s29
    %s49 = sphi 0, %s49
    %s51 = sphi 0, %s49
    %s52 = sphi 0, %s51
    %s66 = sphi 0, %s52
    %s70 = sphi 0, %s70
    %s72 = sphi 0, %s70
    %s73 = sphi 0, %s72
    %s87 = sphi 0, %s73
    %s91 = sphi 0, %s91
    %s93 = sphi 0, %s91
    %s94 = sphi 0, %s93
    %s108 = sphi 0, %s94
    %s112 = sphi 0, %s112
    %s114 = sphi 0, %s112
    %s115 = sphi 0, %s114
    %s129 = sphi 0, %s115
    %s133 = sphi 0, %s133
    %s135 = sphi 0, %s133
    %s136 = sphi 0, %s135
    %s150 = sphi 0, %s136
    %s154 = sphi 0, %s154
    %s156 = sphi 0, %s154
    %s157 = sphi 0, %s156
    %s171 = sphi 0, %s157
    %s175 = sphi 0, %s175
    %s177 = sphi 0, %s175
    %s178 = sphi 0, %s177
    %s192 = sphi 0, %s178
    %s196 = sphi 0, %s196
    %s198 = sphi 0, %s196
    %s199 = sphi 0, %s198
    %s213 = sphi 0, %s199
    %s219 = sphi 0, %s221
    %s222 = sphi 0, %s219
    %s223 = sphi 0, %s222
    %s239 = sphi 0, %s223
  $region4: #{score_guided_autoencoder_forward.1} parent=0 // loop_header_branch
    %18 = sbr.rel (%p16) target = $region8
  $region5: #{score_guided_autoencoder_forward.1} parent=0 // loop_body
    %s20 = ssub.s32 %s15, 1
    %s21 = ssub.s32 %s15, 2
    %s22 = sadd.s32 %s15, 1
    %s23 = ssub.s32 %s15, %s22
    %p24 = scmp.eq.s32.totalorder %s23, 0
    %s26 = sadd.s32 %s25, 1
    %s27 = scalar_select %p24, %s25, %s26
    %p30 = pneg %p24
    %p31 = scmp.eq.s32.totalorder %s15, 1
    %p32 = por %p30, %p31
    %p33 = scmp.ne.s32.totalorder %s25, %s28
    %p34 = scmp.eq.s32.totalorder %s15, 0
    %p35 = por %p33, %p34
    %p36 = scmp.ne.s32.totalorder %s25, %s28
    %p37 = scmp.eq.s32.totalorder %s20, 1
    %p38 = por %p36, %p37
    %p39 = scmp.ne.s32.totalorder %s28, %s29
    %p40 = scmp.eq.s32.totalorder %s20, 0
    %p41 = por %p39, %p40
    %p42 = scmp.ne.s32.totalorder %s28, %s29
    %p43 = scmp.eq.s32.totalorder %s21, 1
    %p44 = por %p42, %p43
    %p46 = scmp.ne.s32.totalorder %s29, %s45
    %p47 = scmp.eq.s32.totalorder %s21, 0
    %p48 = por %p46, %p47
    %s50 = sadd.s32 %s49, 1
    %p53 = scmp.eq.s32.totalorder %s15, 1
    %p54 = scmp.ne.s32.totalorder %s49, %s51
    %p55 = scmp.eq.s32.totalorder %s15, 0
    %p56 = por %p54, %p55
    %p57 = scmp.ne.s32.totalorder %s49, %s51
    %p58 = scmp.eq.s32.totalorder %s20, 1
    %p59 = por %p57, %p58
    %p60 = scmp.ne.s32.totalorder %s51, %s52
    %p61 = scmp.eq.s32.totalorder %s20, 0
    %p62 = por %p60, %p61
    %p63 = scmp.ne.s32.totalorder %s51, %s52
    %p64 = scmp.eq.s32.totalorder %s21, 1
    %p65 = por %p63, %p64
    %p67 = scmp.ne.s32.totalorder %s52, %s66
    %p68 = scmp.eq.s32.totalorder %s21, 0
    %p69 = por %p67, %p68
    %s71 = sadd.s32 %s70, 1
    %p74 = scmp.eq.s32.totalorder %s15, 1
    %p75 = scmp.ne.s32.totalorder %s70, %s72
    %p76 = scmp.eq.s32.totalorder %s15, 0
    %p77 = por %p75, %p76
    %p78 = scmp.ne.s32.totalorder %s70, %s72
    %p79 = scmp.eq.s32.totalorder %s20, 1
    %p80 = por %p78, %p79
    %p81 = scmp.ne.s32.totalorder %s72, %s73
    %p82 = scmp.eq.s32.totalorder %s20, 0
    %p83 = por %p81, %p82
    %p84 = scmp.ne.s32.totalorder %s72, %s73
    %p85 = scmp.eq.s32.totalorder %s21, 1
    %p86 = por %p84, %p85
    %p88 = scmp.ne.s32.totalorder %s73, %s87
    %p89 = scmp.eq.s32.totalorder %s21, 0
    %p90 = por %p88, %p89
    %s92 = sadd.s32 %s91, 1
    %p95 = scmp.eq.s32.totalorder %s15, 1
    %p96 = scmp.ne.s32.totalorder %s91, %s93
    %p97 = scmp.eq.s32.totalorder %s15, 0
    %p98 = por %p96, %p97
    %p99 = scmp.ne.s32.totalorder %s91, %s93
    %p100 = scmp.eq.s32.totalorder %s20, 1
    %p101 = por %p99, %p100
    %p102 = scmp.ne.s32.totalorder %s93, %s94
    %p103 = scmp.eq.s32.totalorder %s20, 0
    %p104 = por %p102, %p103
    %p105 = scmp.ne.s32.totalorder %s93, %s94
    %p106 = scmp.eq.s32.totalorder %s21, 1
    %p107 = por %p105, %p106
    %p109 = scmp.ne.s32.totalorder %s94, %s108
    %p110 = scmp.eq.s32.totalorder %s21, 0
    %p111 = por %p109, %p110
    %s113 = sadd.s32 %s112, 1
    %p116 = scmp.eq.s32.totalorder %s15, 1
    %p117 = scmp.ne.s32.totalorder %s112, %s114
    %p118 = scmp.eq.s32.totalorder %s15, 0
    %p119 = por %p117, %p118
    %p120 = scmp.ne.s32.totalorder %s112, %s114
    %p121 = scmp.eq.s32.totalorder %s20, 1
    %p122 = por %p120, %p121
    %p123 = scmp.ne.s32.totalorder %s114, %s115
    %p124 = scmp.eq.s32.totalorder %s20, 0
    %p125 = por %p123, %p124
    %p126 = scmp.ne.s32.totalorder %s114, %s115
    %p127 = scmp.eq.s32.totalorder %s21, 1
    %p128 = por %p126, %p127
    %p130 = scmp.ne.s32.totalorder %s115, %s129
    %p131 = scmp.eq.s32.totalorder %s21, 0
    %p132 = por %p130, %p131
    %s134 = sadd.s32 %s133, 1
    %p137 = scmp.eq.s32.totalorder %s15, 1
    %p138 = scmp.ne.s32.totalorder %s133, %s135
    %p139 = scmp.eq.s32.totalorder %s15, 0
    %p140 = por %p138, %p139
    %p141 = scmp.ne.s32.totalorder %s133, %s135
    %p142 = scmp.eq.s32.totalorder %s20, 1
    %p143 = por %p141, %p142
    %p144 = scmp.ne.s32.totalorder %s135, %s136
    %p145 = scmp.eq.s32.totalorder %s20, 0
    %p146 = por %p144, %p145
    %p147 = scmp.ne.s32.totalorder %s135, %s136
    %p148 = scmp.eq.s32.totalorder %s21, 1
    %p149 = por %p147, %p148
    %p151 = scmp.ne.s32.totalorder %s136, %s150
    %p152 = scmp.eq.s32.totalorder %s21, 0
    %p153 = por %p151, %p152
    %s155 = sadd.s32 %s154, 1
    %p158 = scmp.eq.s32.totalorder %s15, 1
    %p159 = scmp.ne.s32.totalorder %s154, %s156
    %p160 = scmp.eq.s32.totalorder %s15, 0
    %p161 = por %p159, %p160
    %p162 = scmp.ne.s32.totalorder %s154, %s156
    %p163 = scmp.eq.s32.totalorder %s20, 1
    %p164 = por %p162, %p163
    %p165 = scmp.ne.s32.totalorder %s156, %s157
    %p166 = scmp.eq.s32.totalorder %s20, 0
    %p167 = por %p165, %p166
    %p168 = scmp.ne.s32.totalorder %s156, %s157
    %p169 = scmp.eq.s32.totalorder %s21, 1
    %p170 = por %p168, %p169
    %p172 = scmp.ne.s32.totalorder %s157, %s171
    %p173 = scmp.eq.s32.totalorder %s21, 0
    %p174 = por %p172, %p173
    %s176 = sadd.s32 %s175, 1
    %p179 = scmp.eq.s32.totalorder %s15, 1
    %p180 = scmp.ne.s32.totalorder %s175, %s177
    %p181 = scmp.eq.s32.totalorder %s15, 0
    %p182 = por %p180, %p181
    %p183 = scmp.ne.s32.totalorder %s175, %s177
    %p184 = scmp.eq.s32.totalorder %s20, 1
    %p185 = por %p183, %p184
    %p186 = scmp.ne.s32.totalorder %s177, %s178
    %p187 = scmp.eq.s32.totalorder %s20, 0
    %p188 = por %p186, %p187
    %p189 = scmp.ne.s32.totalorder %s177, %s178
    %p190 = scmp.eq.s32.totalorder %s21, 1
    %p191 = por %p189, %p190
    %p193 = scmp.ne.s32.totalorder %s178, %s192
    %p194 = scmp.eq.s32.totalorder %s21, 0
    %p195 = por %p193, %p194
    %s197 = sadd.s32 %s196, 1
    %p200 = scmp.eq.s32.totalorder %s15, 1
    %p201 = scmp.ne.s32.totalorder %s196, %s198
    %p202 = scmp.eq.s32.totalorder %s15, 0
    %p203 = por %p201, %p202
    %p204 = scmp.ne.s32.totalorder %s196, %s198
    %p205 = scmp.eq.s32.totalorder %s20, 1
    %p206 = por %p204, %p205
    %p207 = scmp.ne.s32.totalorder %s198, %s199
    %p208 = scmp.eq.s32.totalorder %s20, 0
    %p209 = por %p207, %p208
    %p210 = scmp.ne.s32.totalorder %s198, %s199
    %p211 = scmp.eq.s32.totalorder %s21, 1
    %p212 = por %p210, %p211
    %p214 = scmp.ne.s32.totalorder %s199, %s213
    %p215 = scmp.eq.s32.totalorder %s21, 0
    %p216 = por %p214, %p215
    %s217 = ssub.s32 %s15, %s22
    %p218 = scmp.eq.s32.totalorder %s217, 0
    %s220 = sadd.s32 %s219, 1
    %s221 = scalar_select %p218, %s219, %s220
    %p224 = pneg %p218
    %p225 = scmp.eq.s32.totalorder %s15, 1
    %p226 = por %p224, %p225
    %p227 = scmp.ne.s32.totalorder %s219, %s222
    %p228 = scmp.eq.s32.totalorder %s15, 0
    %p229 = por %p227, %p228
    %p230 = scmp.ne.s32.totalorder %s219, %s222
    %p231 = scmp.eq.s32.totalorder %s20, 1
    %p232 = por %p230, %p231
    %p233 = scmp.ne.s32.totalorder %s222, %s223
    %p234 = scmp.eq.s32.totalorder %s20, 0
    %p235 = por %p233, %p234
    %p236 = scmp.ne.s32.totalorder %s222, %s223
    %p237 = scmp.eq.s32.totalorder %s21, 1
    %p238 = por %p236, %p237
    %p240 = scmp.ne.s32.totalorder %s223, %s239
    %p241 = scmp.eq.s32.totalorder %s21, 0
    %p242 = por %p240, %p241
    %p243 = scmp.le.s32.totalorder 1, %s15
    %p244 = scmp.lt.s32.totalorder %s15, 3
    %p245 = pnand %p243, %p244
    %p246 = pneg %p245
    // Predicated region
    $region9: #{score_guided_autoencoder_forward.1} parent=5 // pred_check
      _
    $region10: #{score_guided_autoencoder_forward.1} parent=5 // pred_check_branch
      %248 = sbr.rel (%p245) target = $region12
    $region11: #{score_guided_autoencoder_forward.1} parent=5 // pred_region
      %s249 = ssub.s32 %s15, 1
      // Predicated region
      $region13: #{score_guided_autoencoder_forward.1} parent=11 // pred_check
        %p250 = pneg %p62
      $region14: #{score_guided_autoencoder_forward.1} parent=11 // pred_check_branch
        %252 = sbr.rel (%p250) target = $region16
      $region15: #{score_guided_autoencoder_forward.1} parent=11 // pred_region
        _
      $region16: #{score_guided_autoencoder_forward.1} parent=11 // pred_fallthru
        _
      // Predicated region
      $region17: #{score_guided_autoencoder_forward.1} parent=11 // pred_check
        %p253 = pneg %p83
      $region18: #{score_guided_autoencoder_forward.1} parent=11 // pred_check_branch
        %255 = sbr.rel (%p253) target = $region20
      $region19: #{score_guided_autoencoder_forward.1} parent=11 // pred_region
        _
      $region20: #{score_guided_autoencoder_forward.1} parent=11 // pred_fallthru
        _
      // Predicated region
      $region21: #{score_guided_autoencoder_forward.1} parent=11 // pred_check
        %p256 = pneg %p104
      $region22: #{score_guided_autoencoder_forward.1} parent=11 // pred_check_branch
        %258 = sbr.rel (%p256) target = $region24
      $region23: #{score_guided_autoencoder_forward.1} parent=11 // pred_region
        _
      $region24: #{score_guided_autoencoder_forward.1} parent=11 // pred_fallthru
        _
      // Predicated region
      $region25: #{score_guided_autoencoder_forward.1} parent=11 // pred_check
        %p259 = pneg %p125
      $region26: #{score_guided_autoencoder_forward.1} parent=11 // pred_check_branch
        %261 = sbr.rel (%p259) target = $region28
      $region27: #{score_guided_autoencoder_forward.1} parent=11 // pred_region
        _
      $region28: #{score_guided_autoencoder_forward.1} parent=11 // pred_fallthru
        _
      // Predicated region
      $region29: #{score_guided_autoencoder_forward.1} parent=11 // pred_check
        %p262 = pneg %p146
      $region30: #{score_guided_autoencoder_forward.1} parent=11 // pred_check_branch
        %264 = sbr.rel (%p262) target = $region32
      $region31: #{score_guided_autoencoder_forward.1} parent=11 // pred_region
        _
      $region32: #{score_guided_autoencoder_forward.1} parent=11 // pred_fallthru
        _
      // Predicated region
      $region33: #{score_guided_autoencoder_forward.1} parent=11 // pred_check
        %p265 = pneg %p167
      $region34: #{score_guided_autoencoder_forward.1} parent=11 // pred_check_branch
        %267 = sbr.rel (%p265) target = $region36
      $region35: #{score_guided_autoencoder_forward.1} parent=11 // pred_region
        _
      $region36: #{score_guided_autoencoder_forward.1} parent=11 // pred_fallthru
        _
      // Predicated region
      $region37: #{score_guided_autoencoder_forward.1} parent=11 // pred_check
        %p268 = pneg %p188
      $region38: #{score_guided_autoencoder_forward.1} parent=11 // pred_check_branch
        %270 = sbr.rel (%p268) target = $region40
      $region39: #{score_guided_autoencoder_forward.1} parent=11 // pred_region
        _
      $region40: #{score_guided_autoencoder_forward.1} parent=11 // pred_fallthru
        _
      // Predicated region
      $region41: #{score_guided_autoencoder_forward.1} parent=11 // pred_check
        %p271 = pneg %p209
      $region42: #{score_guided_autoencoder_forward.1} parent=11 // pred_check_branch
        %273 = sbr.rel (%p271) target = $region44
      $region43: #{score_guided_autoencoder_forward.1} parent=11 // pred_region
        _
      $region44: #{score_guided_autoencoder_forward.1} parent=11 // pred_fallthru
        _
    $region12: #{score_guided_autoencoder_forward.1} parent=5 // pred_fallthru
      _
    %p274 = scmp.lt.s32.totalorder %s15, 2
    // Predicated region
    $region45: #{score_guided_autoencoder_forward.1} parent=5 // pred_check
      %p275 = pneg %p274
    $region46: #{score_guided_autoencoder_forward.1} parent=5 // pred_check_branch
      %277 = sbr.rel (%p275) target = $region48
    $region47: #{score_guided_autoencoder_forward.1} parent=5 // pred_region
      // Predicated region
      $region49: #{score_guided_autoencoder_forward.1} parent=47 // pred_check
        %p278 = pneg %p35
      $region50: #{score_guided_autoencoder_forward.1} parent=47 // pred_check_branch
        %280 = sbr.rel (%p278) target = $region52
      $region51: #{score_guided_autoencoder_forward.1} parent=47 // pred_region
        %s281 = smul.u32 16, %s15
        %p282 = scmp.lt.s32.totalorder %s281, 31
        %s283 = scalar_select %p282, %s281, 31
        %s284 = smul.addr %s283, 8
        %s285 = scalar_lea.vmem %s0, %s284
        %s286 = smul.u32 16, %s15
      $region52: #{score_guided_autoencoder_forward.1} parent=47 // pred_fallthru
        _
    $region48: #{score_guided_autoencoder_forward.1} parent=5 // pred_fallthru
      _
    %p287 = scmp.le.s32.totalorder 1, %s15
    %p288 = scmp.lt.s32.totalorder %s15, 3
    %p289 = pnand %p287, %p288
    %p290 = pneg %p289
    // Predicated region
    $region53: #{score_guided_autoencoder_forward.1} parent=5 // pred_check
      _
    $region54: #{score_guided_autoencoder_forward.1} parent=5 // pred_check_branch
      %292 = sbr.rel (%p289) target = $region56
    $region55: #{score_guided_autoencoder_forward.1} parent=5 // pred_region
      %s293 = ssub.s32 %s15, 1
      %s294 = smul.u32 16, %s20
      %p295 = scmp.lt.s32.totalorder %s294, 31
      %s296 = scalar_select %p295, %s294, 31
      %s297 = smul.addr %s296, 8
      %s298 = scalar_lea.vmem %s0, %s297
      %p299 = pneg %p41
      %p300 = pneg %p38
      %p301 = pneg %p62
      %p302 = pneg %p59
      %p303 = pneg %p83
      %p304 = pneg %p80
      %p305 = pneg %p104
      %p306 = pneg %p101
      %p307 = pneg %p125
      %p308 = pneg %p122
      %p309 = pneg %p146
      %p310 = pneg %p143
      %p311 = pneg %p167
      %p312 = pneg %p164
      %p313 = pneg %p188
      %p314 = pneg %p185
      %p315 = pneg %p209
      %p316 = pneg %p206
      %p317 = pneg %p235
      %p318 = pneg %p232
      %s319 = smul.u32 16, %s20
      %p320 = scmp.lt.s32.totalorder %s319, 31
      %s321 = scalar_select %p320, %s319, 31
      %s322 = smul.addr %s321, 8
      %s323 = scalar_lea.vmem %s9, %s322
      %s324 = smul.u32 16, %s20
      %p325 = scmp.lt.s32.totalorder %s324, 31
      %s326 = scalar_select %p325, %s324, 31
      %s327 = smul.addr %s326, 8
      %s328 = scalar_lea.vmem %s0, %s327
      %s329 = smul.u32 16, %s20
      %s330 = smul.u32 16, %s20
      %p331 = scmp.lt.s32.totalorder %s330, 31
      %s332 = scalar_select %p331, %s330, 31
      %s333 = smul.addr %s332, 8
      %s334 = scalar_lea.vmem %s9, %s333
      %s335 = smul.u32 16, %s20
      %v336 = vld [vmem:[%s328] sm:$0xff]
      %v337 = vld [vmem:[%s328 + $0x8] sm:$0xff]
      %v338 = vld [vmem:[%s328 + $0x10] sm:$0xff]
      %v339 = vld [vmem:[%s328 + $0x18] sm:$0xff]
      %v340 = vld [vmem:[%s328 + $0x20] sm:$0xff]
      %v341 = vld [vmem:[%s328 + $0x28] sm:$0xff]
      %v342 = vld [vmem:[%s328 + $0x30] sm:$0xff]
      %v343 = vld [vmem:[%s328 + $0x38] sm:$0xff]
      %v344 = vld [vmem:[%s328 + $0x40] sm:$0xff]
      %v345 = vld [vmem:[%s328 + $0x48] sm:$0xff]
      %v346 = vld [vmem:[%s328 + $0x50] sm:$0xff]
      %v347 = vld [vmem:[%s328 + $0x58] sm:$0xff]
      %v348 = vld [vmem:[%s328 + $0x60] sm:$0xff]
      %v349 = vld [vmem:[%s328 + $0x68] sm:$0xff]
      %v350 = vld [vmem:[%s328 + $0x70] sm:$0xff]
      %v351 = vld [vmem:[%s328 + $0x78] sm:$0xff]
      %v352 = vld [vmem:[%s1] sm:$0xff]
      %v353 = vld [vmem:[%s1 + $0x8] sm:$0xff]
      %v354 = vld [vmem:[%s1 + $0x10] sm:$0xff]
      %v355 = vld [vmem:[%s1 + $0x18] sm:$0xff]
      %v356 = vld [vmem:[%s1 + $0x20] sm:$0xff]
      %v357 = vld [vmem:[%s1 + $0x28] sm:$0xff]
      %v358 = vld [vmem:[%s1 + $0x30] sm:$0xff]
      %v359 = vld [vmem:[%s1 + $0x38] sm:$0xff]
      %v360 = vld [vmem:[%s2] sm:$0x1]
      %v362 = vperm.slane %v360, 0
      %vm364 = vcmask 523264
      %v366 = vsel %vm364, %v336, 0
      %v369 = vsel %vm364, %v337, 0
      %v372 = vsel %vm364, %v338, 0
      %v375 = vsel %vm364, %v339, 0
      %v378 = vsel %vm364, %v340, 0
      %v381 = vsel %vm364, %v341, 0
      %v384 = vsel %vm364, %v342, 0
      %v387 = vsel %vm364, %v343, 0
      %v390 = vsel %vm364, %v344, 0
      %v393 = vsel %vm364, %v345, 0
      %v396 = vsel %vm364, %v346, 0
      %v399 = vsel %vm364, %v347, 0
      %v402 = vsel %vm364, %v348, 0
      %v405 = vsel %vm364, %v349, 0
      %v408 = vsel %vm364, %v350, 0
      %v411 = vsel %vm364, %v351, 0
      %413 = vmatpush.msra.mxu0 0.0
      %414 = vmatpush.msra.mxu0 0.0
      %415 = vmatpush.msra.mxu0 0.0
      %416 = vmatpush.msra.mxu0 0.0
      %417 = vmatpush.msra.mxu0 0.0
      %418 = vmatpush.msra.mxu0 0.0
      %419 = vmatpush.msra.mxu0 0.0
      %420 = vmatpush.msra.mxu0 0.0
      %421 = vmatpush.msra.mxu0 %v359
      %422 = vmatpush.msra.mxu0 %v358
      %423 = vmatpush.msra.mxu0 %v357
      %424 = vmatpush.msra.mxu0 %v356
      %425 = vmatpush.msra.mxu0 %v355
      %426 = vmatpush.msra.mxu0 %v354
      %427 = vmatpush.msra.mxu0 %v353
      %428 = vmatpush.msra.mxu0 %v352
      %429 = vmatmul.f32.gmra.mxu0 %v366
      %v430 = vpop.f32.mrf.mxu0
      %v431 = vadd.f32 %v362, %v430
      %432 = vmatmul.f32.gmra.mxu0 %v369
      %v433 = vpop.f32.mrf.mxu0
      %v434 = vadd.f32 %v362, %v433
      %435 = vmatmul.f32.gmra.mxu0 %v372
      %v436 = vpop.f32.mrf.mxu0
      %v437 = vadd.f32 %v362, %v436
      %438 = vmatmul.f32.gmra.mxu0 %v375
      %v439 = vpop.f32.mrf.mxu0
      %v440 = vadd.f32 %v362, %v439
      %441 = vmatmul.f32.gmra.mxu0 %v378
      %v442 = vpop.f32.mrf.mxu0
      %v443 = vadd.f32 %v362, %v442
      %444 = vmatmul.f32.gmra.mxu0 %v381
      %v445 = vpop.f32.mrf.mxu0
      %v446 = vadd.f32 %v362, %v445
      %447 = vmatmul.f32.gmra.mxu0 %v384
      %v448 = vpop.f32.mrf.mxu0
      %v449 = vadd.f32 %v362, %v448
      %450 = vmatmul.f32.gmra.mxu0 %v387
      %v451 = vpop.f32.mrf.mxu0
      %v452 = vadd.f32 %v362, %v451
      %453 = vmatmul.f32.gmra.mxu0 %v390
      %v454 = vpop.f32.mrf.mxu0
      %v455 = vadd.f32 %v362, %v454
      %456 = vmatmul.f32.gmra.mxu0 %v393
      %v457 = vpop.f32.mrf.mxu0
      %v458 = vadd.f32 %v362, %v457
      %459 = vmatmul.f32.gmra.mxu0 %v396
      %v460 = vpop.f32.mrf.mxu0
      %v461 = vadd.f32 %v362, %v460
      %462 = vmatmul.f32.gmra.mxu0 %v399
      %v463 = vpop.f32.mrf.mxu0
      %v464 = vadd.f32 %v362, %v463
      %465 = vmatmul.f32.gmra.mxu0 %v402
      %v466 = vpop.f32.mrf.mxu0
      %v467 = vadd.f32 %v362, %v466
      %468 = vmatmul.f32.gmra.mxu0 %v405
      %v469 = vpop.f32.mrf.mxu0
      %v470 = vadd.f32 %v362, %v469
      %471 = vmatmul.f32.gmra.mxu0 %v408
      %v472 = vpop.f32.mrf.mxu0
      %v473 = vadd.f32 %v362, %v472
      %474 = vmatmul.f32.gmra.mxu0 %v411
      %v475 = vpop.f32.mrf.mxu0
      %v476 = vadd.f32 %v362, %v475
      %477 = vdwg.mxu0
      %v478 = vmax.f32 %v431, 0.0
      %v479 = vmax.f32 %v434, 0.0
      %v480 = vmax.f32 %v437, 0.0
      %v481 = vmax.f32 %v440, 0.0
      %v482 = vmax.f32 %v443, 0.0
      %v483 = vmax.f32 %v446, 0.0
      %v484 = vmax.f32 %v449, 0.0
      %v485 = vmax.f32 %v452, 0.0
      %v486 = vmax.f32 %v455, 0.0
      %v487 = vmax.f32 %v458, 0.0
      %v488 = vmax.f32 %v461, 0.0
      %v489 = vmax.f32 %v464, 0.0
      %v490 = vmax.f32 %v467, 0.0
      %v491 = vmax.f32 %v470, 0.0
      %v492 = vmax.f32 %v473, 0.0
      %v493 = vmax.f32 %v476, 0.0
      %v494 = vld [vmem:[%s3] sm:$0xff]
      %v495 = vld [vmem:[%s3 + $0x8] sm:$0xff]
      %v496 = vld [vmem:[%s3 + $0x10] sm:$0xff]
      %v497 = vld [vmem:[%s3 + $0x18] sm:$0xff]
      %v498 = vld [vmem:[%s3 + $0x20] sm:$0xff]
      %v499 = vld [vmem:[%s4] sm:$0x1]
      %v501 = vperm.slane %v499, 0
      %vm503 = vcmask 326656
      %v505 = vsel %vm503, %v478, 0
      %v508 = vsel %vm503, %v479, 0
      %v511 = vsel %vm503, %v480, 0
      %v514 = vsel %vm503, %v481, 0
      %v517 = vsel %vm503, %v482, 0
      %v520 = vsel %vm503, %v483, 0
      %v523 = vsel %vm503, %v484, 0
      %v526 = vsel %vm503, %v485, 0
      %v529 = vsel %vm503, %v486, 0
      %v532 = vsel %vm503, %v487, 0
      %v535 = vsel %vm503, %v488, 0
      %v538 = vsel %vm503, %v489, 0
      %v541 = vsel %vm503, %v490, 0
      %v544 = vsel %vm503, %v491, 0
      %v547 = vsel %vm503, %v492, 0
      %v550 = vsel %vm503, %v493, 0
      %552 = vmatpush.msra.mxu0 0.0
      %553 = vmatpush.msra.mxu0 0.0
      %554 = vmatpush.msra.mxu0 0.0
      %555 = vmatpush.msra.mxu0 0.0
      %556 = vmatpush.msra.mxu0 0.0
      %557 = vmatpush.msra.mxu0 0.0
      %558 = vmatpush.msra.mxu0 0.0
      %559 = vmatpush.msra.mxu0 0.0
      %560 = vmatpush.msra.mxu0 0.0
      %561 = vmatpush.msra.mxu0 0.0
      %562 = vmatpush.msra.mxu0 0.0
      %563 = vmatpush.msra.mxu0 %v498
      %564 = vmatpush.msra.mxu0 %v497
      %565 = vmatpush.msra.mxu0 %v496
      %566 = vmatpush.msra.mxu0 %v495
      %567 = vmatpush.msra.mxu0 %v494
      %568 = vmatmul.f32.gmra.mxu0 %v505
      %v569 = vpop.f32.mrf.mxu0
      %v570 = vadd.f32 %v501, %v569
      %571 = vmatmul.f32.gmra.mxu0 %v508
      %v572 = vpop.f32.mrf.mxu0
      %v573 = vadd.f32 %v501, %v572
      %574 = vmatmul.f32.gmra.mxu0 %v511
      %v575 = vpop.f32.mrf.mxu0
      %v576 = vadd.f32 %v501, %v575
      %577 = vmatmul.f32.gmra.mxu0 %v514
      %v578 = vpop.f32.mrf.mxu0
      %v579 = vadd.f32 %v501, %v578
      %580 = vmatmul.f32.gmra.mxu0 %v517
      %v581 = vpop.f32.mrf.mxu0
      %v582 = vadd.f32 %v501, %v581
      %583 = vmatmul.f32.gmra.mxu0 %v520
      %v584 = vpop.f32.mrf.mxu0
      %v585 = vadd.f32 %v501, %v584
      %586 = vmatmul.f32.gmra.mxu0 %v523
      %v587 = vpop.f32.mrf.mxu0
      %v588 = vadd.f32 %v501, %v587
      %589 = vmatmul.f32.gmra.mxu0 %v526
      %v590 = vpop.f32.mrf.mxu0
      %v591 = vadd.f32 %v501, %v590
      %592 = vmatmul.f32.gmra.mxu0 %v529
      %v593 = vpop.f32.mrf.mxu0
      %v594 = vadd.f32 %v501, %v593
      %595 = vmatmul.f32.gmra.mxu0 %v532
      %v596 = vpop.f32.mrf.mxu0
      %v597 = vadd.f32 %v501, %v596
      %598 = vmatmul.f32.gmra.mxu0 %v535
      %v599 = vpop.f32.mrf.mxu0
      %v600 = vadd.f32 %v501, %v599
      %601 = vmatmul.f32.gmra.mxu0 %v538
      %v602 = vpop.f32.mrf.mxu0
      %v603 = vadd.f32 %v501, %v602
      %604 = vmatmul.f32.gmra.mxu0 %v541
      %v605 = vpop.f32.mrf.mxu0
      %v606 = vadd.f32 %v501, %v605
      %607 = vmatmul.f32.gmra.mxu0 %v544
      %v608 = vpop.f32.mrf.mxu0
      %v609 = vadd.f32 %v501, %v608
      %610 = vmatmul.f32.gmra.mxu0 %v547
      %v611 = vpop.f32.mrf.mxu0
      %v612 = vadd.f32 %v501, %v611
      %613 = vmatmul.f32.gmra.mxu0 %v550
      %v614 = vpop.f32.mrf.mxu0
      %v615 = vadd.f32 %v501, %v614
      %616 = vdwg.mxu0
      %v617 = vmax.f32 %v570, 0.0
      %v618 = vmax.f32 %v573, 0.0
      %v619 = vmax.f32 %v576, 0.0
      %v620 = vmax.f32 %v579, 0.0
      %v621 = vmax.f32 %v582, 0.0
      %v622 = vmax.f32 %v585, 0.0
      %v623 = vmax.f32 %v588, 0.0
      %v624 = vmax.f32 %v591, 0.0
      %v625 = vmax.f32 %v594, 0.0
      %v626 = vmax.f32 %v597, 0.0
      %v627 = vmax.f32 %v600, 0.0
      %v628 = vmax.f32 %v603, 0.0
      %v629 = vmax.f32 %v606, 0.0
      %v630 = vmax.f32 %v609, 0.0
      %v631 = vmax.f32 %v612, 0.0
      %v632 = vmax.f32 %v615, 0.0
      %v633 = vld [vmem:[%s5] sm:$0xff]
      %v634 = vld [vmem:[%s5 + $0x8] sm:$0xff]
      %v635 = vld [vmem:[%s5 + $0x10] sm:$0xf]
      %v636 = vld [vmem:[%s6] sm:$0x1]
      %v638 = vperm.slane %v636, 0
      %vm640 = vcmask 162816
      %v642 = vsel %vm640, %v617, 0
      %v645 = vsel %vm640, %v618, 0
      %v648 = vsel %vm640, %v619, 0
      %v651 = vsel %vm640, %v620, 0
      %v654 = vsel %vm640, %v621, 0
      %v657 = vsel %vm640, %v622, 0
      %v660 = vsel %vm640, %v623, 0
      %v663 = vsel %vm640, %v624, 0
      %v666 = vsel %vm640, %v625, 0
      %v669 = vsel %vm640, %v626, 0
      %v672 = vsel %vm640, %v627, 0
      %v675 = vsel %vm640, %v628, 0
      %v678 = vsel %vm640, %v629, 0
      %v681 = vsel %vm640, %v630, 0
      %v684 = vsel %vm640, %v631, 0
      %v687 = vsel %vm640, %v632, 0
      %vm689 = vcmask 1043456
      %v691 = vsel %vm689, %v635, 0
      %693 = vmatpush.msra.mxu0 0.0
      %694 = vmatpush.msra.mxu0 0.0
      %695 = vmatpush.msra.mxu0 0.0
      %696 = vmatpush.msra.mxu0 0.0
      %697 = vmatpush.msra.mxu0 0.0
      %698 = vmatpush.msra.mxu0 0.0
      %699 = vmatpush.msra.mxu0 0.0
      %700 = vmatpush.msra.mxu0 0.0
      %701 = vmatpush.msra.mxu0 0.0
      %702 = vmatpush.msra.mxu0 0.0
      %703 = vmatpush.msra.mxu0 0.0
      %704 = vmatpush.msra.mxu0 0.0
      %705 = vmatpush.msra.mxu0 0.0
      %706 = vmatpush.msra.mxu0 %v691
      %707 = vmatpush.msra.mxu0 %v634
      %708 = vmatpush.msra.mxu0 %v633
      %709 = vmatmul.f32.gmra.mxu0 %v642
      %v710 = vpop.f32.mrf.mxu0
      %v711 = vadd.f32 %v638, %v710
      %712 = vmatmul.f32.gmra.mxu0 %v645
      %v713 = vpop.f32.mrf.mxu0
      %v714 = vadd.f32 %v638, %v713
      %715 = vmatmul.f32.gmra.mxu0 %v648
      %v716 = vpop.f32.mrf.mxu0
      %v717 = vadd.f32 %v638, %v716
      %718 = vmatmul.f32.gmra.mxu0 %v651
      %v719 = vpop.f32.mrf.mxu0
      %v720 = vadd.f32 %v638, %v719
      %721 = vmatmul.f32.gmra.mxu0 %v654
      %v722 = vpop.f32.mrf.mxu0
      %v723 = vadd.f32 %v638, %v722
      %724 = vmatmul.f32.gmra.mxu0 %v657
      %v725 = vpop.f32.mrf.mxu0
      %v726 = vadd.f32 %v638, %v725
      %727 = vmatmul.f32.gmra.mxu0 %v660
      %v728 = vpop.f32.mrf.mxu0
      %v729 = vadd.f32 %v638, %v728
      %730 = vmatmul.f32.gmra.mxu0 %v663
      %v731 = vpop.f32.mrf.mxu0
      %v732 = vadd.f32 %v638, %v731
      %733 = vmatmul.f32.gmra.mxu0 %v666
      %v734 = vpop.f32.mrf.mxu0
      %v735 = vadd.f32 %v638, %v734
      %736 = vmatmul.f32.gmra.mxu0 %v669
      %v737 = vpop.f32.mrf.mxu0
      %v738 = vadd.f32 %v638, %v737
      %739 = vmatmul.f32.gmra.mxu0 %v672
      %v740 = vpop.f32.mrf.mxu0
      %v741 = vadd.f32 %v638, %v740
      %742 = vmatmul.f32.gmra.mxu0 %v675
      %v743 = vpop.f32.mrf.mxu0
      %v744 = vadd.f32 %v638, %v743
      %745 = vmatmul.f32.gmra.mxu0 %v678
      %v746 = vpop.f32.mrf.mxu0
      %v747 = vadd.f32 %v638, %v746
      %748 = vmatmul.f32.gmra.mxu0 %v681
      %v749 = vpop.f32.mrf.mxu0
      %v750 = vadd.f32 %v638, %v749
      %751 = vmatmul.f32.gmra.mxu0 %v684
      %v752 = vpop.f32.mrf.mxu0
      %v753 = vadd.f32 %v638, %v752
      %754 = vmatmul.f32.gmra.mxu0 %v687
      %v755 = vpop.f32.mrf.mxu0
      %v756 = vadd.f32 %v638, %v755
      %757 = vdwg.mxu0
      %v758 = vmax.f32 %v711, 0.0
      %v759 = vmax.f32 %v714, 0.0
      %v760 = vmax.f32 %v717, 0.0
      %v761 = vmax.f32 %v720, 0.0
      %v762 = vmax.f32 %v723, 0.0
      %v763 = vmax.f32 %v726, 0.0
      %v764 = vmax.f32 %v729, 0.0
      %v765 = vmax.f32 %v732, 0.0
      %v766 = vmax.f32 %v735, 0.0
      %v767 = vmax.f32 %v738, 0.0
      %v768 = vmax.f32 %v741, 0.0
      %v769 = vmax.f32 %v744, 0.0
      %v770 = vmax.f32 %v747, 0.0
      %v771 = vmax.f32 %v750, 0.0
      %v772 = vmax.f32 %v753, 0.0
      %v773 = vmax.f32 %v756, 0.0
      %v774 = vld [vmem:[%s7] sm:$0xff]
      %v775 = vld [vmem:[%s7 + $0x8] sm:$0xff]
      %v776 = vld [vmem:[%s7 + $0x10] sm:$0xff]
      %v777 = vld [vmem:[%s7 + $0x18] sm:$0xff]
      %v778 = vld [vmem:[%s7 + $0x20] sm:$0xff]
      %v779 = vld [vmem:[%s7 + $0x28] sm:$0xff]
      %v780 = vld [vmem:[%s7 + $0x30] sm:$0x3]
      %v781 = vld [vmem:[%s8] sm:$0x1]
      %v783 = vperm.slane %v781, 0
      %vm785 = vcmask 408576
      %v787 = vsel %vm785, %v758, 0
      %v790 = vsel %vm785, %v759, 0
      %v793 = vsel %vm785, %v760, 0
      %v796 = vsel %vm785, %v761, 0
      %v799 = vsel %vm785, %v762, 0
      %v802 = vsel %vm785, %v763, 0
      %v805 = vsel %vm785, %v764, 0
      %v808 = vsel %vm785, %v765, 0
      %v811 = vsel %vm785, %v766, 0
      %v814 = vsel %vm785, %v767, 0
      %v817 = vsel %vm785, %v768, 0
      %v820 = vsel %vm785, %v769, 0
      %v823 = vsel %vm785, %v770, 0
      %v826 = vsel %vm785, %v771, 0
      %v829 = vsel %vm785, %v772, 0
      %v832 = vsel %vm785, %v773, 0
      %vm834 = vcmask 1041408
      %v836 = vsel %vm834, %v780, 0
      %838 = vmatpush.msra.mxu0 0.0
      %839 = vmatpush.msra.mxu0 0.0
      %840 = vmatpush.msra.mxu0 0.0
      %841 = vmatpush.msra.mxu0 0.0
      %842 = vmatpush.msra.mxu0 0.0
      %843 = vmatpush.msra.mxu0 0.0
      %844 = vmatpush.msra.mxu0 0.0
      %845 = vmatpush.msra.mxu0 0.0
      %846 = vmatpush.msra.mxu0 0.0
      %847 = vmatpush.msra.mxu0 %v836
      %848 = vmatpush.msra.mxu0 %v779
      %849 = vmatpush.msra.mxu0 %v778
      %850 = vmatpush.msra.mxu0 %v777
      %851 = vmatpush.msra.mxu0 %v776
      %852 = vmatpush.msra.mxu0 %v775
      %853 = vmatpush.msra.mxu0 %v774
      %854 = vmatmul.f32.gmra.mxu0 %v787
      %v855 = vpop.f32.mrf.mxu0
      %v856 = vadd.f32 %v783, %v855
      %857 = vmatmul.f32.gmra.mxu0 %v790
      %v858 = vpop.f32.mrf.mxu0
      %v859 = vadd.f32 %v783, %v858
      %860 = vmatmul.f32.gmra.mxu0 %v793
      %v861 = vpop.f32.mrf.mxu0
      %v862 = vadd.f32 %v783, %v861
      %863 = vmatmul.f32.gmra.mxu0 %v796
      %v864 = vpop.f32.mrf.mxu0
      %v865 = vadd.f32 %v783, %v864
      %866 = vmatmul.f32.gmra.mxu0 %v799
      %v867 = vpop.f32.mrf.mxu0
      %v868 = vadd.f32 %v783, %v867
      %869 = vmatmul.f32.gmra.mxu0 %v802
      %v870 = vpop.f32.mrf.mxu0
      %v871 = vadd.f32 %v783, %v870
      %872 = vmatmul.f32.gmra.mxu0 %v805
      %v873 = vpop.f32.mrf.mxu0
      %v874 = vadd.f32 %v783, %v873
      %875 = vmatmul.f32.gmra.mxu0 %v808
      %v876 = vpop.f32.mrf.mxu0
      %v877 = vadd.f32 %v783, %v876
      %878 = vmatmul.f32.gmra.mxu0 %v811
      %v879 = vpop.f32.mrf.mxu0
      %v880 = vadd.f32 %v783, %v879
      %881 = vmatmul.f32.gmra.mxu0 %v814
      %v882 = vpop.f32.mrf.mxu0
      %v883 = vadd.f32 %v783, %v882
      %884 = vmatmul.f32.gmra.mxu0 %v817
      %v885 = vpop.f32.mrf.mxu0
      %v886 = vadd.f32 %v783, %v885
      %887 = vmatmul.f32.gmra.mxu0 %v820
      %v888 = vpop.f32.mrf.mxu0
      %v889 = vadd.f32 %v783, %v888
      %890 = vmatmul.f32.gmra.mxu0 %v823
      %v891 = vpop.f32.mrf.mxu0
      %v892 = vadd.f32 %v783, %v891
      %893 = vmatmul.f32.gmra.mxu0 %v826
      %v894 = vpop.f32.mrf.mxu0
      %v895 = vadd.f32 %v783, %v894
      %896 = vmatmul.f32.gmra.mxu0 %v829
      %v897 = vpop.f32.mrf.mxu0
      %v898 = vadd.f32 %v783, %v897
      %899 = vmatmul.f32.gmra.mxu0 %v832
      %v900 = vpop.f32.mrf.mxu0
      %v901 = vadd.f32 %v783, %v900
      %902 = vdwg.mxu0
      %903 = vrot.lane.b32.xlu0 %v617, 65
      %v904 = vpop.permute.xlu0 %903
      %905 = vrot.lane.b32.xlu0 %v618, 65
      %v906 = vpop.permute.xlu0 %905
      %907 = vrot.lane.b32.xlu0 %v619, 65
      %v908 = vpop.permute.xlu0 %907
      %909 = vrot.lane.b32.xlu0 %v620, 65
      %v910 = vpop.permute.xlu0 %909
      %911 = vrot.lane.b32.xlu0 %v621, 65
      %v912 = vpop.permute.xlu0 %911
      %913 = vrot.lane.b32.xlu0 %v622, 65
      %v914 = vpop.permute.xlu0 %913
      %915 = vrot.lane.b32.xlu0 %v623, 65
      %v916 = vpop.permute.xlu0 %915
      %917 = vrot.lane.b32.xlu0 %v624, 65
      %v918 = vpop.permute.xlu0 %917
      %919 = vrot.lane.b32.xlu0 %v625, 65
      %v920 = vpop.permute.xlu0 %919
      %921 = vrot.lane.b32.xlu0 %v626, 65
      %v922 = vpop.permute.xlu0 %921
      %923 = vrot.lane.b32.xlu0 %v627, 65
      %v924 = vpop.permute.xlu0 %923
      %925 = vrot.lane.b32.xlu0 %v628, 65
      %v926 = vpop.permute.xlu0 %925
      %927 = vrot.lane.b32.xlu0 %v629, 65
      %v928 = vpop.permute.xlu0 %927
      %929 = vrot.lane.b32.xlu0 %v630, 65
      %v930 = vpop.permute.xlu0 %929
      %931 = vrot.lane.b32.xlu0 %v631, 65
      %v932 = vpop.permute.xlu0 %931
      %933 = vrot.lane.b32.xlu0 %v632, 65
      %v934 = vpop.permute.xlu0 %933
      %vm951 = vcmask 531456
      %v952 = vsel %vm951, %v856, %v904
      %v953 = vsel %vm951, %v859, %v906
      %v954 = vsel %vm951, %v862, %v908
      %v955 = vsel %vm951, %v865, %v910
      %v956 = vsel %vm951, %v868, %v912
      %v957 = vsel %vm951, %v871, %v914
      %v958 = vsel %vm951, %v874, %v916
      %v959 = vsel %vm951, %v877, %v918
      %v960 = vsel %vm951, %v880, %v920
      %v961 = vsel %vm951, %v883, %v922
      %v962 = vsel %vm951, %v886, %v924
      %v963 = vsel %vm951, %v889, %v926
      %v964 = vsel %vm951, %v892, %v928
      %v965 = vsel %vm951, %v895, %v930
      %v966 = vsel %vm951, %v898, %v932
      %v967 = vsel %vm951, %v901, %v934
      %vm968 = vcmask 695296
      %v969 = vsel %vm968, %v952, 0.0
      %v970 = vsel %vm968, %v953, 0.0
      %v971 = vsel %vm968, %v954, 0.0
      %v972 = vsel %vm968, %v955, 0.0
      %v973 = vsel %vm968, %v956, 0.0
      %v974 = vsel %vm968, %v957, 0.0
      %v975 = vsel %vm968, %v958, 0.0
      %v976 = vsel %vm968, %v959, 0.0
      %v977 = vsel %vm968, %v960, 0.0
      %v978 = vsel %vm968, %v961, 0.0
      %v979 = vsel %vm968, %v962, 0.0
      %v980 = vsel %vm968, %v963, 0.0
      %v981 = vsel %vm968, %v964, 0.0
      %v982 = vsel %vm968, %v965, 0.0
      %v983 = vsel %vm968, %v966, 0.0
      %v984 = vsel %vm968, %v967, 0.0
      %985 = vst [vmem:[%s334] sm:$0xff] %v969
      %986 = vst [vmem:[%s334 + $0x8] sm:$0xff] %v970
      %987 = vst [vmem:[%s334 + $0x10] sm:$0xff] %v971
      %988 = vst [vmem:[%s334 + $0x18] sm:$0xff] %v972
      %989 = vst [vmem:[%s334 + $0x20] sm:$0xff] %v973
      %990 = vst [vmem:[%s334 + $0x28] sm:$0xff] %v974
      %991 = vst [vmem:[%s334 + $0x30] sm:$0xff] %v975
      %992 = vst [vmem:[%s334 + $0x38] sm:$0xff] %v976
      %993 = vst [vmem:[%s334 + $0x40] sm:$0xff] %v977
      %994 = vst [vmem:[%s334 + $0x48] sm:$0xff] %v978
      %995 = vst [vmem:[%s334 + $0x50] sm:$0xff] %v979
      %996 = vst [vmem:[%s334 + $0x58] sm:$0xff] %v980
      %997 = vst [vmem:[%s334 + $0x60] sm:$0xff] %v981
      %998 = vst [vmem:[%s334 + $0x68] sm:$0xff] %v982
      %999 = vst [vmem:[%s334 + $0x70] sm:$0xff] %v983
      %1000 = vst [vmem:[%s334 + $0x78] sm:$0xff] %v984
      %s1001 = smul.u32 16, %s20
      %p1002 = scmp.lt.s32.totalorder %s1001, 31
      %s1003 = scalar_select %p1002, %s1001, 31
      %s1004 = smul.addr %s1003, 8
      %s1005 = scalar_lea.vmem %s9, %s1004
      // Predicated region
      $region57: #{score_guided_autoencoder_forward.1} parent=55 // pred_check
        %p1006 = pneg %p232
      $region58: #{score_guided_autoencoder_forward.1} parent=55 // pred_check_branch
        %1008 = sbr.rel (%p1006) target = $region60
      $region59: #{score_guided_autoencoder_forward.1} parent=55 // pred_region
        %s1009 = smul.u32 16, %s20
      $region60: #{score_guided_autoencoder_forward.1} parent=55 // pred_fallthru
        _
    $region56: #{score_guided_autoencoder_forward.1} parent=5 // pred_fallthru
      _
    %p1010 = scmp.le.s32.totalorder 2, %s15
    // Predicated region
    $region61: #{score_guided_autoencoder_forward.1} parent=5 // pred_check
      %p1011 = pneg %p1010
    $region62: #{score_guided_autoencoder_forward.1} parent=5 // pred_check_branch
      %1013 = sbr.rel (%p1011) target = $region64
    $region63: #{score_guided_autoencoder_forward.1} parent=5 // pred_region
      %s1014 = ssub.s32 %s15, 2
      // Predicated region
      $region65: #{score_guided_autoencoder_forward.1} parent=63 // pred_check
        %p1015 = pneg %p238
      $region66: #{score_guided_autoencoder_forward.1} parent=63 // pred_check_branch
        %1017 = sbr.rel (%p1015) target = $region68
      $region67: #{score_guided_autoencoder_forward.1} parent=63 // pred_region
        %s1018 = smul.u32 16, %s21
        %p1019 = scmp.lt.s32.totalorder %s1018, 31
        %s1020 = scalar_select %p1019, %s1018, 31
        %s1021 = smul.addr %s1020, 8
        %s1022 = scalar_lea.vmem %s9, %s1021
      $region68: #{score_guided_autoencoder_forward.1} parent=63 // pred_fallthru
        _
    $region64: #{score_guided_autoencoder_forward.1} parent=5 // pred_fallthru
      _
  $region6: #{score_guided_autoencoder_forward.1} parent=0 // loop_footer
    %s19 = sadd.s32 1, %s15
  $region7: #{score_guided_autoencoder_forward.1} parent=0 // loop_footer_branch
    %14 = sbr.rel target = $region3
  $region8: #{score_guided_autoencoder_forward.1} parent=0 // loop_exit
    _

</llo_original>
